<compile_context>
chip_gen: v7x
topology: tpu7x:2x2x1
jax: 0.10.0
libtpu: 0.0.40
codegen_flags: <defaults>
</compile_context>

<pallas_src>
import math
import jax
import jax.numpy as jnp
from jax.experimental import pallas as pl
from jax.experimental.pallas import tpu as pltpu

LN_EPS = 1e-5       # nn.LayerNorm default eps
_LANE = 128         # TPU lane width


def _head_kernel(x_ref, lnw_ref, lnb_ref,
                 fcw_ref, fcb_ref,
                 pw_ref, pb_ref,
                 o_ref):
    # ---- LayerNorm over last dim (f32 statistics) ----
    x = x_ref[...].astype(jnp.float32)                       # (tm, in_dim)
    mean = jnp.mean(x, axis=-1, keepdims=True)
    cent = x - mean
    var = jnp.mean(cent * cent, axis=-1, keepdims=True)
    xhat = cent * jax.lax.rsqrt(var + LN_EPS)
    xln = xhat * lnw_ref[...].astype(jnp.float32) + lnb_ref[...].astype(jnp.float32)

    # ---- fc + exact (erf) GELU; matmul operands in weight dtype, f32 accum ----
    h = jnp.dot(xln.astype(fcw_ref.dtype), fcw_ref[...],
                preferred_element_type=jnp.float32) + fcb_ref[...].astype(jnp.float32)
    inv_sqrt2 = jnp.float32(1.0 / math.sqrt(2.0))
    g = 0.5 * h * (1.0 + jax.lax.erf(h * inv_sqrt2))          # nn.GELU() default

    # ---- fused projection heads: single lane-dense matmul + store ----
    o = jnp.dot(g.astype(pw_ref.dtype), pw_ref[...],
                preferred_element_type=jnp.float32) + pb_ref[...].astype(jnp.float32)
    o_ref[...] = o.astype(o_ref.dtype)


def clip_embeds_proj_head(x, params, *, row_tile=256, use_bf16_matmul=False,
                          vmem_limit_bytes=48 * 1024 * 1024):
    """x: (B, S, in_dim). params: dict of weights in PyTorch layout."""
    B, S, in_dim = x.shape
    N = B * S
    xf = x.reshape(N, in_dim)

    w_dtype = jnp.bfloat16 if use_bf16_matmul else jnp.float32

    # LayerNorm affine params, kept in f32.
    ln_w = params["ln_w"].reshape(1, in_dim).astype(jnp.float32)
    ln_b = params["ln_b"].reshape(1, in_dim).astype(jnp.float32)

    # fc: (out, in) -> (in, out); bias -> (1, out)  (f32 bias add).
    fc_w = params["fc_w"].T.astype(w_dtype)                   # (in_dim, hidden)
    fc_b = params["fc_b"].reshape(1, -1).astype(jnp.float32)

    out1_dim = params["p1_w"].shape[0]
    out2_dim = params["p2_w"].shape[0]
    out_cat = out1_dim + out2_dim

    # Fuse the two heads along the output axis and pad columns to 128 lanes.
    p_w = jnp.concatenate([params["p1_w"].T, params["p2_w"].T], axis=1)   # (hidden, out_cat)
    p_b = jnp.concatenate([params["p1_b"], params["p2_b"]], axis=0).reshape(1, -1)
    out_pad = pl.cdiv(out_cat, _LANE) * _LANE
    if out_pad != out_cat:
        p_w = jnp.pad(p_w, ((0, 0), (0, out_pad - out_cat)))
        p_b = jnp.pad(p_b, ((0, 0), (0, out_pad - out_cat)))
    p_w = p_w.astype(w_dtype)
    p_b = p_b.astype(jnp.float32)

    # Pad the row axis up to the tile so large tiles work for any batch*seq.
    n_pad = pl.cdiv(N, row_tile) * row_tile
    if n_pad != N:
        xf = jnp.pad(xf, ((0, n_pad - N), (0, 0)))

    grid = (n_pad // row_tile,)

    # Weights/biases never change across the grid -> single-buffer them.
    def resident(arr):
        return pl.BlockSpec(arr.shape, lambda i: (0, 0),
                            pipeline_mode=pl.Buffered(1))

    out = pl.pallas_call(
        _head_kernel,
        out_shape=jax.ShapeDtypeStruct((n_pad, out_pad), x.dtype),
        grid_spec=pltpu.PrefetchScalarGridSpec(
            num_scalar_prefetch=0,
            grid=grid,
            in_specs=[
                pl.BlockSpec((row_tile, in_dim), lambda i: (i, 0)),  # x rows
                resident(ln_w), resident(ln_b),
                resident(fc_w), resident(fc_b),
                resident(p_w), resident(p_b),
            ],
            out_specs=pl.BlockSpec((row_tile, out_pad), lambda i: (i, 0)),
        ),
        compiler_params=pltpu.CompilerParams(
            dimension_semantics=("parallel",),           # megacore-shard row tiles
            vmem_limit_bytes=vmem_limit_bytes),
    )(xf, ln_w, ln_b, fc_w, fc_b, p_w, p_b)

    o1 = out[:N, :out1_dim].reshape(B, S, out1_dim)
    o2 = out[:N, out1_dim:out_cat].reshape(B, S, out2_dim)
    return o1, o2


def init_params(key, in_dim, hidden_dim, out_dim_1, out_dim_2):
    """Deterministic synthetic parameters matching the PyTorch module's shapes."""
    ks = jax.random.split(key, 6)
    s = 0.05
    return {
        "ln_w": jnp.ones((in_dim,), jnp.float32),
        "ln_b": jnp.zeros((in_dim,), jnp.float32),
        "fc_w": s * jax.random.normal(ks[0], (hidden_dim, in_dim), jnp.float32),
        "fc_b": s * jax.random.normal(ks[1], (hidden_dim,), jnp.float32),
        "p1_w": s * jax.random.normal(ks[2], (out_dim_1, hidden_dim), jnp.float32),
        "p1_b": s * jax.random.normal(ks[3], (out_dim_1,), jnp.float32),
        "p2_w": s * jax.random.normal(ks[4], (out_dim_2, hidden_dim), jnp.float32),
        "p2_b": s * jax.random.normal(ks[5], (out_dim_2,), jnp.float32),
    }


def reference(x, p):
    """Pure-JAX reference of the PyTorch forward."""
    mean = jnp.mean(x, axis=-1, keepdims=True)
    var = jnp.mean((x - mean) ** 2, axis=-1, keepdims=True)
    xln = (x - mean) / jnp.sqrt(var + LN_EPS) * p["ln_w"] + p["ln_b"]
    h = xln @ p["fc_w"].T + p["fc_b"]
    g = 0.5 * h * (1.0 + jax.lax.erf(h / jnp.sqrt(2.0)))
    o1 = g @ p["p1_w"].T + p["p1_b"]
    o2 = g @ p["p2_w"].T + p["p2_b"]
    return o1, o2


if __name__ == "__main__":
    B, S = 2, 8
    in_dim, hidden_dim, out_dim_1, out_dim_2 = 32, 64, 48, 24

    key = jax.random.PRNGKey(0)
    kx, kp = jax.random.split(key)
    x = jax.random.normal(kx, (B, S, in_dim), jnp.float32)
    params = init_params(kp, in_dim, hidden_dim, out_dim_1, out_dim_2)

    out1, out2 = clip_embeds_proj_head(x, params)
    jax.block_until_ready((out1, out2))

    r1, r2 = reference(x, params)
    assert out1.shape == (B, S, out_dim_1) and out2.shape == (B, S, out_dim_2)
    assert jnp.allclose(out1, r1, atol=1e-4, rtol=1e-4)
    assert jnp.allclose(out2, r2, atol=1e-4, rtol=1e-4)

    print("KERNEL_OK")
</pallas_src>

<mosaic_0001>
module attributes {stable_mosaic.version = 11 : i64} {
  func.func @_head_kernel(%arg0: i32, %arg1: memref<256x32xf32, #tpu.memory_space<vmem>>, %arg2: memref<1x32xf32, #tpu.memory_space<vmem>>, %arg3: memref<1x32xf32, #tpu.memory_space<vmem>>, %arg4: memref<32x64xf32, #tpu.memory_space<vmem>>, %arg5: memref<1x64xf32, #tpu.memory_space<vmem>>, %arg6: memref<64x128xf32, #tpu.memory_space<vmem>>, %arg7: memref<1x128xf32, #tpu.memory_space<vmem>>, %arg8: memref<256x128xf32, #tpu.memory_space<vmem>>) attributes {dimension_semantics = [#tpu.dimension_semantics<parallel>], iteration_bounds = array<i64: 1>, scalar_prefetch = 0 : i64, scratch_operands = 0 : i64, tpu.core_type = #tpu.core_type<tc>, window_params = [{transform_indices = @transform_0, window_bounds = array<i64: 256, 32>}, {pipeline_mode = #tpu.pipeline_mode<synchronous>, transform_indices = @transform_1, window_bounds = array<i64: 1, 32>}, {pipeline_mode = #tpu.pipeline_mode<synchronous>, transform_indices = @transform_2, window_bounds = array<i64: 1, 32>}, {pipeline_mode = #tpu.pipeline_mode<synchronous>, transform_indices = @transform_3, window_bounds = array<i64: 32, 64>}, {pipeline_mode = #tpu.pipeline_mode<synchronous>, transform_indices = @transform_4, window_bounds = array<i64: 1, 64>}, {pipeline_mode = #tpu.pipeline_mode<synchronous>, transform_indices = @transform_5, window_bounds = array<i64: 64, 128>}, {pipeline_mode = #tpu.pipeline_mode<synchronous>, transform_indices = @transform_6, window_bounds = array<i64: 1, 128>}, {transform_indices = @transform_7, window_bounds = array<i64: 256, 128>}]} {
    %c0 = arith.constant 0 : index
    %c0_0 = arith.constant 0 : index
    %0 = vector.load %arg1[%c0, %c0_0] : memref<256x32xf32, #tpu.memory_space<vmem>>, vector<256x32xf32>
    %cst = arith.constant dense<0.000000e+00> : vector<256xf32>
    %1 = vector.multi_reduction <add>, %0, %cst [1] : vector<256x32xf32> to vector<256xf32>
    %2 = vector.shape_cast %1 : vector<256xf32> to vector<256x1xf32>
    %cst_1 = arith.constant 3.200000e+01 : f32
    %3 = vector.broadcast %cst_1 : f32 to vector<256x1xf32>
    %4 = arith.divf %2, %3 : vector<256x1xf32>
    %5 = vector.broadcast %4 : vector<256x1xf32> to vector<256x32xf32>
    %6 = arith.subf %0, %5 : vector<256x32xf32>
    %7 = arith.mulf %6, %6 : vector<256x32xf32>
    %cst_2 = arith.constant dense<0.000000e+00> : vector<256xf32>
    %8 = vector.multi_reduction <add>, %7, %cst_2 [1] : vector<256x32xf32> to vector<256xf32>
    %9 = vector.shape_cast %8 : vector<256xf32> to vector<256x1xf32>
    %cst_3 = arith.constant 3.200000e+01 : f32
    %10 = vector.broadcast %cst_3 : f32 to vector<256x1xf32>
    %11 = arith.divf %9, %10 : vector<256x1xf32>
    %cst_4 = arith.constant 9.99999974E-6 : f32
    %12 = vector.broadcast %cst_4 : f32 to vector<256x1xf32>
    %13 = arith.addf %11, %12 : vector<256x1xf32>
    %14 = math.rsqrt %13 : vector<256x1xf32>
    %15 = vector.broadcast %14 : vector<256x1xf32> to vector<256x32xf32>
    %16 = arith.mulf %6, %15 : vector<256x32xf32>
    %c0_5 = arith.constant 0 : index
    %c0_6 = arith.constant 0 : index
    %17 = vector.load %arg2[%c0_5, %c0_6] : memref<1x32xf32, #tpu.memory_space<vmem>>, vector<1x32xf32>
    %18 = vector.broadcast %17 : vector<1x32xf32> to vector<256x32xf32>
    %19 = arith.mulf %16, %18 : vector<256x32xf32>
    %c0_7 = arith.constant 0 : index
    %c0_8 = arith.constant 0 : index
    %20 = vector.load %arg3[%c0_7, %c0_8] : memref<1x32xf32, #tpu.memory_space<vmem>>, vector<1x32xf32>
    %21 = vector.broadcast %20 : vector<1x32xf32> to vector<256x32xf32>
    %22 = arith.addf %19, %21 : vector<256x32xf32>
    %c0_9 = arith.constant 0 : index
    %c0_10 = arith.constant 0 : index
    %23 = vector.load %arg4[%c0_9, %c0_10] : memref<32x64xf32, #tpu.memory_space<vmem>>, vector<32x64xf32>
    %cst_11 = arith.constant dense<0.000000e+00> : vector<256x64xf32>
    %24 = tpu.matmul %22, %23, %cst_11 {dimension_numbers = #tpu.dot_dimension_numbers<[1], [0], [0], [1], [0, 0, 1, 1], [], []>} : vector<256x32xf32>, vector<32x64xf32>, vector<256x64xf32> -> vector<256x64xf32>
    %c0_12 = arith.constant 0 : index
    %c0_13 = arith.constant 0 : index
    %25 = vector.load %arg5[%c0_12, %c0_13] : memref<1x64xf32, #tpu.memory_space<vmem>>, vector<1x64xf32>
    %26 = vector.broadcast %25 : vector<1x64xf32> to vector<256x64xf32>
    %27 = arith.addf %24, %26 : vector<256x64xf32>
    %cst_14 = arith.constant 5.000000e-01 : f32
    %28 = vector.broadcast %cst_14 : f32 to vector<256x64xf32>
    %29 = arith.mulf %28, %27 : vector<256x64xf32>
    %cst_15 = arith.constant 0.707106769 : f32
    %30 = vector.broadcast %cst_15 : f32 to vector<256x64xf32>
    %31 = arith.mulf %27, %30 : vector<256x64xf32>
    %32 = math.erf %31 : vector<256x64xf32>
    %cst_16 = arith.constant 1.000000e+00 : f32
    %33 = vector.broadcast %cst_16 : f32 to vector<256x64xf32>
    %34 = arith.addf %33, %32 : vector<256x64xf32>
    %35 = arith.mulf %29, %34 : vector<256x64xf32>
    %c0_17 = arith.constant 0 : index
    %c0_18 = arith.constant 0 : index
    %36 = vector.load %arg6[%c0_17, %c0_18] : memref<64x128xf32, #tpu.memory_space<vmem>>, vector<64x128xf32>
    %cst_19 = arith.constant dense<0.000000e+00> : vector<256x128xf32>
    %37 = tpu.matmul %35, %36, %cst_19 {dimension_numbers = #tpu.dot_dimension_numbers<[1], [0], [0], [1], [0, 0, 1, 1], [], []>} : vector<256x64xf32>, vector<64x128xf32>, vector<256x128xf32> -> vector<256x128xf32>
    %c0_20 = arith.constant 0 : index
    %c0_21 = arith.constant 0 : index
    %38 = vector.load %arg7[%c0_20, %c0_21] : memref<1x128xf32, #tpu.memory_space<vmem>>, vector<1x128xf32>
    %39 = vector.broadcast %38 : vector<1x128xf32> to vector<256x128xf32>
    %40 = arith.addf %37, %39 : vector<256x128xf32>
    %c0_22 = arith.constant 0 : index
    %c0_23 = arith.constant 0 : index
    %41 = vector.load %arg8[%c0_22, %c0_23] : memref<256x128xf32, #tpu.memory_space<vmem>>, vector<256x128xf32>
    tpu.vector_store %arg8[%c0_22, %c0_23], %40 {strides = array<i32>} : memref<256x128xf32, #tpu.memory_space<vmem>>, vector<256x128xf32>,
    return
  }
  func.func @transform_0(%arg0: i32) -> (i32, i32) {
    %c0_i32 = arith.constant 0 : i32
    %c0_i32_0 = arith.constant 0 : i32
    return %arg0, %c0_i32 : i32, i32
  }
  func.func @transform_1(%arg0: i32) -> (i32, i32) {
    %c0_i32 = arith.constant 0 : i32
    %c0_i32_0 = arith.constant 0 : i32
    %c0_i32_1 = arith.constant 0 : i32
    return %c0_i32, %c0_i32_0 : i32, i32
  }
  func.func @transform_2(%arg0: i32) -> (i32, i32) {
    %c0_i32 = arith.constant 0 : i32
    %c0_i32_0 = arith.constant 0 : i32
    %c0_i32_1 = arith.constant 0 : i32
    return %c0_i32, %c0_i32_0 : i32, i32
  }
  func.func @transform_3(%arg0: i32) -> (i32, i32) {
    %c0_i32 = arith.constant 0 : i32
    %c0_i32_0 = arith.constant 0 : i32
    %c0_i32_1 = arith.constant 0 : i32
    return %c0_i32, %c0_i32_0 : i32, i32
  }
  func.func @transform_4(%arg0: i32) -> (i32, i32) {
    %c0_i32 = arith.constant 0 : i32
    %c0_i32_0 = arith.constant 0 : i32
    %c0_i32_1 = arith.constant 0 : i32
    return %c0_i32, %c0_i32_0 : i32, i32
  }
  func.func @transform_5(%arg0: i32) -> (i32, i32) {
    %c0_i32 = arith.constant 0 : i32
    %c0_i32_0 = arith.constant 0 : i32
    %c0_i32_1 = arith.constant 0 : i32
    return %c0_i32, %c0_i32_0 : i32, i32
  }
  func.func @transform_6(%arg0: i32) -> (i32, i32) {
    %c0_i32 = arith.constant 0 : i32
    %c0_i32_0 = arith.constant 0 : i32
    %c0_i32_1 = arith.constant 0 : i32
    return %c0_i32, %c0_i32_0 : i32, i32
  }
  func.func @transform_7(%arg0: i32) -> (i32, i32) {
    %c0_i32 = arith.constant 0 : i32
    %c0_i32_0 = arith.constant 0 : i32
    return %arg0, %c0_i32 : i32, i32
  }
}

</mosaic_0001>

<llo_original>
// kernel: tpu_custom_call.1
$region0: #{tpu_custom_call.1}
  #allocation0 [shape = 'u32[]', space=smem, size = 0x4, offset = 0x4, fixed_abs, tag = 'smem constant byte address 0x4 - core index']
  #allocation1 [shape = 'u32[144,128]{1,0:T(1,128)}', space=vmem, size = 0x12000, scoped, tag = 'internal scratch']
  %s0 = inlined_call_operand.vmem [shape: f32[256,32], index: 0, kind: input, shape index: {}]
  %s1 = inlined_call_operand.vmem [shape: f32[1,32], index: 1, kind: input, shape index: {}]
  %s2 = inlined_call_operand.vmem [shape: f32[1,32], index: 2, kind: input, shape index: {}]
  %s3 = inlined_call_operand.vmem [shape: f32[32,64], index: 3, kind: input, shape index: {}]
  %s4 = inlined_call_operand.vmem [shape: f32[1,64], index: 4, kind: input, shape index: {}]
  %s5 = inlined_call_operand.vmem [shape: f32[64,128], index: 5, kind: input, shape index: {}]
  %s6 = inlined_call_operand.vmem [shape: f32[1,128], index: 6, kind: input, shape index: {}]
  %s7 = inlined_call_operand.hbm [shape: f32[256,128], index: 7, kind: output, shape index: {}]
  %s8 = sld [smem:[#allocation0]]
  $region38: #{tpu_custom_call.1} parent=0
    _
  %s10 = ssub.s32 1, %s8
  %s11 = scalar_select 0, %s10, %s8
  $region1: #{tpu_custom_call.1} parent=0
    #allocation2 [shape = 'u8[131072]{0}', space=vmem, size = 0x20000, scoped, tag = 'output window, operand 0, single buffered']
    #allocation3 [shape = 's32[1]{0}', space=sflag, size = 0x4, scoped, tag = 'scoped memory for tpu_custom_call.1']
    %12 = vsyncpa [#allocation3], 0
    // Predicated region
    $region2: #{tpu_custom_call.1} parent=1 // pred_check
      _
    $region3: #{tpu_custom_call.1} parent=1 // pred_check_branch
      %14 = sbr.rel (0) target = $region5
    $region4: #{tpu_custom_call.1} parent=1 // pred_region
      _
    $region5: #{tpu_custom_call.1} parent=1 // pred_fallthru
      _
    // Predicated region
    $region6: #{tpu_custom_call.1} parent=1 // pred_check
      _
    $region7: #{tpu_custom_call.1} parent=1 // pred_check_branch
      %16 = sbr.rel (0) target = $region9
    $region8: #{tpu_custom_call.1} parent=1 // pred_region
      _
    $region9: #{tpu_custom_call.1} parent=1 // pred_fallthru
      _
    // Predicated region
    $region10: #{tpu_custom_call.1} parent=1 // pred_check
      _
    $region11: #{tpu_custom_call.1} parent=1 // pred_check_branch
      %18 = sbr.rel (0) target = $region13
    $region12: #{tpu_custom_call.1} parent=1 // pred_region
      _
    $region13: #{tpu_custom_call.1} parent=1 // pred_fallthru
      _
    // Predicated region
    $region14: #{tpu_custom_call.1} parent=1 // pred_check
      _
    $region15: #{tpu_custom_call.1} parent=1 // pred_check_branch
      %20 = sbr.rel (0) target = $region17
    $region16: #{tpu_custom_call.1} parent=1 // pred_region
      _
    $region17: #{tpu_custom_call.1} parent=1 // pred_fallthru
      _
    // Predicated region
    $region18: #{tpu_custom_call.1} parent=1 // pred_check
      _
    $region19: #{tpu_custom_call.1} parent=1 // pred_check_branch
      %22 = sbr.rel (0) target = $region21
    $region20: #{tpu_custom_call.1} parent=1 // pred_region
      _
    $region21: #{tpu_custom_call.1} parent=1 // pred_fallthru
      _
    // Predicated region
    $region22: #{tpu_custom_call.1} parent=1 // pred_check
      _
    $region23: #{tpu_custom_call.1} parent=1 // pred_check_branch
      %24 = sbr.rel (0) target = $region25
    $region24: #{tpu_custom_call.1} parent=1 // pred_region
      _
    $region25: #{tpu_custom_call.1} parent=1 // pred_fallthru
      _
    // Predicated region
    $region26: #{tpu_custom_call.1} parent=1 // pred_check
      _
    $region27: #{tpu_custom_call.1} parent=1 // pred_check_branch
      %26 = sbr.rel (0) target = $region29
    $region28: #{tpu_custom_call.1} parent=1 // pred_region
      _
    $region29: #{tpu_custom_call.1} parent=1 // pred_fallthru
      _
    %v27 = vld [vmem:[%s0] sm:$0xff]
    %v28 = vld [vmem:[%s0 + $0x8] sm:$0xff]
    %v29 = vld [vmem:[%s0 + $0x10] sm:$0xff]
    %v30 = vld [vmem:[%s0 + $0x18] sm:$0xff]
    %v31 = vld [vmem:[%s0 + $0x20] sm:$0xff]
    %v32 = vld [vmem:[%s0 + $0x28] sm:$0xff]
    %v33 = vld [vmem:[%s0 + $0x30] sm:$0xff]
    %v34 = vld [vmem:[%s0 + $0x38] sm:$0xff]
    %v35 = vld [vmem:[%s0 + $0x40] sm:$0xff]
    %v36 = vld [vmem:[%s0 + $0x48] sm:$0xff]
    %v37 = vld [vmem:[%s0 + $0x50] sm:$0xff]
    %v38 = vld [vmem:[%s0 + $0x58] sm:$0xff]
    %v39 = vld [vmem:[%s0 + $0x60] sm:$0xff]
    %v40 = vld [vmem:[%s0 + $0x68] sm:$0xff]
    %v41 = vld [vmem:[%s0 + $0x70] sm:$0xff]
    %v42 = vld [vmem:[%s0 + $0x78] sm:$0xff]
    %v43 = vld [vmem:[%s0 + $0x80] sm:$0xff]
    %v44 = vld [vmem:[%s0 + $0x88] sm:$0xff]
    %v45 = vld [vmem:[%s0 + $0x90] sm:$0xff]
    %v46 = vld [vmem:[%s0 + $0x98] sm:$0xff]
    %v47 = vld [vmem:[%s0 + $0xa0] sm:$0xff]
    %v48 = vld [vmem:[%s0 + $0xa8] sm:$0xff]
    %v49 = vld [vmem:[%s0 + $0xb0] sm:$0xff]
    %v50 = vld [vmem:[%s0 + $0xb8] sm:$0xff]
    %v51 = vld [vmem:[%s0 + $0xc0] sm:$0xff]
    %v52 = vld [vmem:[%s0 + $0xc8] sm:$0xff]
    %v53 = vld [vmem:[%s0 + $0xd0] sm:$0xff]
    %v54 = vld [vmem:[%s0 + $0xd8] sm:$0xff]
    %v55 = vld [vmem:[%s0 + $0xe0] sm:$0xff]
    %v56 = vld [vmem:[%s0 + $0xe8] sm:$0xff]
    %v57 = vld [vmem:[%s0 + $0xf0] sm:$0xff]
    %v58 = vld [vmem:[%s0 + $0xf8] sm:$0xff]
    %vm59 = vcmask 261120
    %v60 = vsel %vm59, %v27, 0.0
    %61 = vadd.xlane.f32.xlu0 %v60
    %v62 = vpop.xlane.xlu0 %61
    %v63 = vsel %vm59, %v28, 0.0
    %64 = vadd.xlane.f32.xlu0 %v63
    %v65 = vpop.xlane.xlu0 %64
    %v66 = vsel %vm59, %v29, 0.0
    %67 = vadd.xlane.f32.xlu0 %v66
    %v68 = vpop.xlane.xlu0 %67
    %v69 = vsel %vm59, %v30, 0.0
    %70 = vadd.xlane.f32.xlu0 %v69
    %v71 = vpop.xlane.xlu0 %70
    %v72 = vsel %vm59, %v31, 0.0
    %73 = vadd.xlane.f32.xlu0 %v72
    %v74 = vpop.xlane.xlu0 %73
    %v75 = vsel %vm59, %v32, 0.0
    %76 = vadd.xlane.f32.xlu0 %v75
    %v77 = vpop.xlane.xlu0 %76
    %v78 = vsel %vm59, %v33, 0.0
    %79 = vadd.xlane.f32.xlu0 %v78
    %v80 = vpop.xlane.xlu0 %79
    %v81 = vsel %vm59, %v34, 0.0
    %82 = vadd.xlane.f32.xlu0 %v81
    %v83 = vpop.xlane.xlu0 %82
    %v84 = vsel %vm59, %v35, 0.0
    %85 = vadd.xlane.f32.xlu0 %v84
    %v86 = vpop.xlane.xlu0 %85
    %v87 = vsel %vm59, %v36, 0.0
    %88 = vadd.xlane.f32.xlu0 %v87
    %v89 = vpop.xlane.xlu0 %88
    %v90 = vsel %vm59, %v37, 0.0
    %91 = vadd.xlane.f32.xlu0 %v90
    %v92 = vpop.xlane.xlu0 %91
    %v93 = vsel %vm59, %v38, 0.0
    %94 = vadd.xlane.f32.xlu0 %v93
    %v95 = vpop.xlane.xlu0 %94
    %v96 = vsel %vm59, %v39, 0.0
    %97 = vadd.xlane.f32.xlu0 %v96
    %v98 = vpop.xlane.xlu0 %97
    %v99 = vsel %vm59, %v40, 0.0
    %100 = vadd.xlane.f32.xlu0 %v99
    %v101 = vpop.xlane.xlu0 %100
    %v102 = vsel %vm59, %v41, 0.0
    %103 = vadd.xlane.f32.xlu0 %v102
    %v104 = vpop.xlane.xlu0 %103
    %v105 = vsel %vm59, %v42, 0.0
    %106 = vadd.xlane.f32.xlu0 %v105
    %v107 = vpop.xlane.xlu0 %106
    %v108 = vsel %vm59, %v43, 0.0
    %109 = vadd.xlane.f32.xlu0 %v108
    %v110 = vpop.xlane.xlu0 %109
    %v111 = vsel %vm59, %v44, 0.0
    %112 = vadd.xlane.f32.xlu0 %v111
    %v113 = vpop.xlane.xlu0 %112
    %v114 = vsel %vm59, %v45, 0.0
    %115 = vadd.xlane.f32.xlu0 %v114
    %v116 = vpop.xlane.xlu0 %115
    %v117 = vsel %vm59, %v46, 0.0
    %118 = vadd.xlane.f32.xlu0 %v117
    %v119 = vpop.xlane.xlu0 %118
    %v120 = vsel %vm59, %v47, 0.0
    %121 = vadd.xlane.f32.xlu0 %v120
    %v122 = vpop.xlane.xlu0 %121
    %v123 = vsel %vm59, %v48, 0.0
    %124 = vadd.xlane.f32.xlu0 %v123
    %v125 = vpop.xlane.xlu0 %124
    %v126 = vsel %vm59, %v49, 0.0
    %127 = vadd.xlane.f32.xlu0 %v126
    %v128 = vpop.xlane.xlu0 %127
    %v129 = vsel %vm59, %v50, 0.0
    %130 = vadd.xlane.f32.xlu0 %v129
    %v131 = vpop.xlane.xlu0 %130
    %v132 = vsel %vm59, %v51, 0.0
    %133 = vadd.xlane.f32.xlu0 %v132
    %v134 = vpop.xlane.xlu0 %133
    %v135 = vsel %vm59, %v52, 0.0
    %136 = vadd.xlane.f32.xlu0 %v135
    %v137 = vpop.xlane.xlu0 %136
    %v138 = vsel %vm59, %v53, 0.0
    %139 = vadd.xlane.f32.xlu0 %v138
    %v140 = vpop.xlane.xlu0 %139
    %v141 = vsel %vm59, %v54, 0.0
    %142 = vadd.xlane.f32.xlu0 %v141
    %v143 = vpop.xlane.xlu0 %142
    %v144 = vsel %vm59, %v55, 0.0
    %145 = vadd.xlane.f32.xlu0 %v144
    %v146 = vpop.xlane.xlu0 %145
    %v147 = vsel %vm59, %v56, 0.0
    %148 = vadd.xlane.f32.xlu0 %v147
    %v149 = vpop.xlane.xlu0 %148
    %v150 = vsel %vm59, %v57, 0.0
    %151 = vadd.xlane.f32.xlu0 %v150
    %v152 = vpop.xlane.xlu0 %151
    %v153 = vsel %vm59, %v58, 0.0
    %154 = vadd.xlane.f32.xlu0 %v153
    %v155 = vpop.xlane.xlu0 %154
    %v156 = vrcp.pop 32.0
    %v157 = vmul.f32 %v62, %v156
    %v158 = vmul.f32 %v65, %v156
    %v159 = vmul.f32 %v68, %v156
    %v160 = vmul.f32 %v71, %v156
    %v161 = vmul.f32 %v74, %v156
    %v162 = vmul.f32 %v77, %v156
    %v163 = vmul.f32 %v80, %v156
    %v164 = vmul.f32 %v83, %v156
    %v165 = vmul.f32 %v86, %v156
    %v166 = vmul.f32 %v89, %v156
    %v167 = vmul.f32 %v92, %v156
    %v168 = vmul.f32 %v95, %v156
    %v169 = vmul.f32 %v98, %v156
    %v170 = vmul.f32 %v101, %v156
    %v171 = vmul.f32 %v104, %v156
    %v172 = vmul.f32 %v107, %v156
    %v173 = vmul.f32 %v110, %v156
    %v174 = vmul.f32 %v113, %v156
    %v175 = vmul.f32 %v116, %v156
    %v176 = vmul.f32 %v119, %v156
    %v177 = vmul.f32 %v122, %v156
    %v178 = vmul.f32 %v125, %v156
    %v179 = vmul.f32 %v128, %v156
    %v180 = vmul.f32 %v131, %v156
    %v181 = vmul.f32 %v134, %v156
    %v182 = vmul.f32 %v137, %v156
    %v183 = vmul.f32 %v140, %v156
    %v184 = vmul.f32 %v143, %v156
    %v185 = vmul.f32 %v146, %v156
    %v186 = vmul.f32 %v149, %v156
    %v187 = vmul.f32 %v152, %v156
    %v188 = vmul.f32 %v155, %v156
    %v189 = vsub.f32 %v27, %v157
    %v190 = vsub.f32 %v28, %v158
    %v191 = vsub.f32 %v29, %v159
    %v192 = vsub.f32 %v30, %v160
    %v193 = vsub.f32 %v31, %v161
    %v194 = vsub.f32 %v32, %v162
    %v195 = vsub.f32 %v33, %v163
    %v196 = vsub.f32 %v34, %v164
    %v197 = vsub.f32 %v35, %v165
    %v198 = vsub.f32 %v36, %v166
    %v199 = vsub.f32 %v37, %v167
    %v200 = vsub.f32 %v38, %v168
    %v201 = vsub.f32 %v39, %v169
    %v202 = vsub.f32 %v40, %v170
    %v203 = vsub.f32 %v41, %v171
    %v204 = vsub.f32 %v42, %v172
    %v205 = vsub.f32 %v43, %v173
    %v206 = vsub.f32 %v44, %v174
    %v207 = vsub.f32 %v45, %v175
    %v208 = vsub.f32 %v46, %v176
    %v209 = vsub.f32 %v47, %v177
    %v210 = vsub.f32 %v48, %v178
    %v211 = vsub.f32 %v49, %v179
    %v212 = vsub.f32 %v50, %v180
    %v213 = vsub.f32 %v51, %v181
    %v214 = vsub.f32 %v52, %v182
    %v215 = vsub.f32 %v53, %v183
    %v216 = vsub.f32 %v54, %v184
    %v217 = vsub.f32 %v55, %v185
    %v218 = vsub.f32 %v56, %v186
    %v219 = vsub.f32 %v57, %v187
    %v220 = vsub.f32 %v58, %v188
    %v221 = vmul.f32 %v189, %v189
    %v222 = vmul.f32 %v190, %v190
    %v223 = vmul.f32 %v191, %v191
    %v224 = vmul.f32 %v192, %v192
    %v225 = vmul.f32 %v193, %v193
    %v226 = vmul.f32 %v194, %v194
    %v227 = vmul.f32 %v195, %v195
    %v228 = vmul.f32 %v196, %v196
    %v229 = vmul.f32 %v197, %v197
    %v230 = vmul.f32 %v198, %v198
    %v231 = vmul.f32 %v199, %v199
    %v232 = vmul.f32 %v200, %v200
    %v233 = vmul.f32 %v201, %v201
    %v234 = vmul.f32 %v202, %v202
    %v235 = vmul.f32 %v203, %v203
    %v236 = vmul.f32 %v204, %v204
    %v237 = vmul.f32 %v205, %v205
    %v238 = vmul.f32 %v206, %v206
    %v239 = vmul.f32 %v207, %v207
    %v240 = vmul.f32 %v208, %v208
    %v241 = vmul.f32 %v209, %v209
    %v242 = vmul.f32 %v210, %v210
    %v243 = vmul.f32 %v211, %v211
    %v244 = vmul.f32 %v212, %v212
    %v245 = vmul.f32 %v213, %v213
    %v246 = vmul.f32 %v214, %v214
    %v247 = vmul.f32 %v215, %v215
    %v248 = vmul.f32 %v216, %v216
    %v249 = vmul.f32 %v217, %v217
    %v250 = vmul.f32 %v218, %v218
    %v251 = vmul.f32 %v219, %v219
    %v252 = vmul.f32 %v220, %v220
    %v253 = vsel %vm59, %v221, 0.0
    %254 = vadd.xlane.f32.xlu0 %v253
    %v255 = vpop.xlane.xlu0 %254
    %v256 = vsel %vm59, %v222, 0.0
    %257 = vadd.xlane.f32.xlu0 %v256
    %v258 = vpop.xlane.xlu0 %257
    %v259 = vsel %vm59, %v223, 0.0
    %260 = vadd.xlane.f32.xlu0 %v259
    %v261 = vpop.xlane.xlu0 %260
    %v262 = vsel %vm59, %v224, 0.0
    %263 = vadd.xlane.f32.xlu0 %v262
    %v264 = vpop.xlane.xlu0 %263
    %v265 = vsel %vm59, %v225, 0.0
    %266 = vadd.xlane.f32.xlu0 %v265
    %v267 = vpop.xlane.xlu0 %266
    %v268 = vsel %vm59, %v226, 0.0
    %269 = vadd.xlane.f32.xlu0 %v268
    %v270 = vpop.xlane.xlu0 %269
    %v271 = vsel %vm59, %v227, 0.0
    %272 = vadd.xlane.f32.xlu0 %v271
    %v273 = vpop.xlane.xlu0 %272
    %v274 = vsel %vm59, %v228, 0.0
    %275 = vadd.xlane.f32.xlu0 %v274
    %v276 = vpop.xlane.xlu0 %275
    %v277 = vsel %vm59, %v229, 0.0
    %278 = vadd.xlane.f32.xlu0 %v277
    %v279 = vpop.xlane.xlu0 %278
    %v280 = vsel %vm59, %v230, 0.0
    %281 = vadd.xlane.f32.xlu0 %v280
    %v282 = vpop.xlane.xlu0 %281
    %v283 = vsel %vm59, %v231, 0.0
    %284 = vadd.xlane.f32.xlu0 %v283
    %v285 = vpop.xlane.xlu0 %284
    %v286 = vsel %vm59, %v232, 0.0
    %287 = vadd.xlane.f32.xlu0 %v286
    %v288 = vpop.xlane.xlu0 %287
    %v289 = vsel %vm59, %v233, 0.0
    %290 = vadd.xlane.f32.xlu0 %v289
    %v291 = vpop.xlane.xlu0 %290
    %v292 = vsel %vm59, %v234, 0.0
    %293 = vadd.xlane.f32.xlu0 %v292
    %v294 = vpop.xlane.xlu0 %293
    %v295 = vsel %vm59, %v235, 0.0
    %296 = vadd.xlane.f32.xlu0 %v295
    %v297 = vpop.xlane.xlu0 %296
    %v298 = vsel %vm59, %v236, 0.0
    %299 = vadd.xlane.f32.xlu0 %v298
    %v300 = vpop.xlane.xlu0 %299
    %v301 = vsel %vm59, %v237, 0.0
    %302 = vadd.xlane.f32.xlu0 %v301
    %v303 = vpop.xlane.xlu0 %302
    %v304 = vsel %vm59, %v238, 0.0
    %305 = vadd.xlane.f32.xlu0 %v304
    %v306 = vpop.xlane.xlu0 %305
    %v307 = vsel %vm59, %v239, 0.0
    %308 = vadd.xlane.f32.xlu0 %v307
    %v309 = vpop.xlane.xlu0 %308
    %v310 = vsel %vm59, %v240, 0.0
    %311 = vadd.xlane.f32.xlu0 %v310
    %v312 = vpop.xlane.xlu0 %311
    %v313 = vsel %vm59, %v241, 0.0
    %314 = vadd.xlane.f32.xlu0 %v313
    %v315 = vpop.xlane.xlu0 %314
    %v316 = vsel %vm59, %v242, 0.0
    %317 = vadd.xlane.f32.xlu0 %v316
    %v318 = vpop.xlane.xlu0 %317
    %v319 = vsel %vm59, %v243, 0.0
    %320 = vadd.xlane.f32.xlu0 %v319
    %v321 = vpop.xlane.xlu0 %320
    %v322 = vsel %vm59, %v244, 0.0
    %323 = vadd.xlane.f32.xlu0 %v322
    %v324 = vpop.xlane.xlu0 %323
    %v325 = vsel %vm59, %v245, 0.0
    %326 = vadd.xlane.f32.xlu0 %v325
    %v327 = vpop.xlane.xlu0 %326
    %v328 = vsel %vm59, %v246, 0.0
    %329 = vadd.xlane.f32.xlu0 %v328
    %v330 = vpop.xlane.xlu0 %329
    %v331 = vsel %vm59, %v247, 0.0
    %332 = vadd.xlane.f32.xlu0 %v331
    %v333 = vpop.xlane.xlu0 %332
    %v334 = vsel %vm59, %v248, 0.0
    %335 = vadd.xlane.f32.xlu0 %v334
    %v336 = vpop.xlane.xlu0 %335
    %v337 = vsel %vm59, %v249, 0.0
    %338 = vadd.xlane.f32.xlu0 %v337
    %v339 = vpop.xlane.xlu0 %338
    %v340 = vsel %vm59, %v250, 0.0
    %341 = vadd.xlane.f32.xlu0 %v340
    %v342 = vpop.xlane.xlu0 %341
    %v343 = vsel %vm59, %v251, 0.0
    %344 = vadd.xlane.f32.xlu0 %v343
    %v345 = vpop.xlane.xlu0 %344
    %v346 = vsel %vm59, %v252, 0.0
    %347 = vadd.xlane.f32.xlu0 %v346
    %v348 = vpop.xlane.xlu0 %347
    %v349 = vmul.f32 %v255, %v156
    %v350 = vmul.f32 %v258, %v156
    %v351 = vmul.f32 %v261, %v156
    %v352 = vmul.f32 %v264, %v156
    %v353 = vmul.f32 %v267, %v156
    %v354 = vmul.f32 %v270, %v156
    %v355 = vmul.f32 %v273, %v156
    %v356 = vmul.f32 %v276, %v156
    %v357 = vmul.f32 %v279, %v156
    %v358 = vmul.f32 %v282, %v156
    %v359 = vmul.f32 %v285, %v156
    %v360 = vmul.f32 %v288, %v156
    %v361 = vmul.f32 %v291, %v156
    %v362 = vmul.f32 %v294, %v156
    %v363 = vmul.f32 %v297, %v156
    %v364 = vmul.f32 %v300, %v156
    %v365 = vmul.f32 %v303, %v156
    %v366 = vmul.f32 %v306, %v156
    %v367 = vmul.f32 %v309, %v156
    %v368 = vmul.f32 %v312, %v156
    %v369 = vmul.f32 %v315, %v156
    %v370 = vmul.f32 %v318, %v156
    %v371 = vmul.f32 %v321, %v156
    %v372 = vmul.f32 %v324, %v156
    %v373 = vmul.f32 %v327, %v156
    %v374 = vmul.f32 %v330, %v156
    %v375 = vmul.f32 %v333, %v156
    %v376 = vmul.f32 %v336, %v156
    %v377 = vmul.f32 %v339, %v156
    %v378 = vmul.f32 %v342, %v156
    %v379 = vmul.f32 %v345, %v156
    %v380 = vmul.f32 %v348, %v156
    %v381 = vadd.f32 %v349, 1e-05
    %v382 = vadd.f32 %v350, 1e-05
    %v383 = vadd.f32 %v351, 1e-05
    %v384 = vadd.f32 %v352, 1e-05
    %v385 = vadd.f32 %v353, 1e-05
    %v386 = vadd.f32 %v354, 1e-05
    %v387 = vadd.f32 %v355, 1e-05
    %v388 = vadd.f32 %v356, 1e-05
    %v389 = vadd.f32 %v357, 1e-05
    %v390 = vadd.f32 %v358, 1e-05
    %v391 = vadd.f32 %v359, 1e-05
    %v392 = vadd.f32 %v360, 1e-05
    %v393 = vadd.f32 %v361, 1e-05
    %v394 = vadd.f32 %v362, 1e-05
    %v395 = vadd.f32 %v363, 1e-05
    %v396 = vadd.f32 %v364, 1e-05
    %v397 = vadd.f32 %v365, 1e-05
    %v398 = vadd.f32 %v366, 1e-05
    %v399 = vadd.f32 %v367, 1e-05
    %v400 = vadd.f32 %v368, 1e-05
    %v401 = vadd.f32 %v369, 1e-05
    %v402 = vadd.f32 %v370, 1e-05
    %v403 = vadd.f32 %v371, 1e-05
    %v404 = vadd.f32 %v372, 1e-05
    %v405 = vadd.f32 %v373, 1e-05
    %v406 = vadd.f32 %v374, 1e-05
    %v407 = vadd.f32 %v375, 1e-05
    %v408 = vadd.f32 %v376, 1e-05
    %v409 = vadd.f32 %v377, 1e-05
    %v410 = vadd.f32 %v378, 1e-05
    %v411 = vadd.f32 %v379, 1e-05
    %v412 = vadd.f32 %v380, 1e-05
    %v413 = vrsqrt.pop %v381
    %v414 = vrsqrt.pop %v382
    %v415 = vrsqrt.pop %v383
    %v416 = vrsqrt.pop %v384
    %v417 = vrsqrt.pop %v385
    %v418 = vrsqrt.pop %v386
    %v419 = vrsqrt.pop %v387
    %v420 = vrsqrt.pop %v388
    %v421 = vrsqrt.pop %v389
    %v422 = vrsqrt.pop %v390
    %v423 = vrsqrt.pop %v391
    %v424 = vrsqrt.pop %v392
    %v425 = vrsqrt.pop %v393
    %v426 = vrsqrt.pop %v394
    %v427 = vrsqrt.pop %v395
    %v428 = vrsqrt.pop %v396
    %v429 = vrsqrt.pop %v397
    %v430 = vrsqrt.pop %v398
    %v431 = vrsqrt.pop %v399
    %v432 = vrsqrt.pop %v400
    %v433 = vrsqrt.pop %v401
    %v434 = vrsqrt.pop %v402
    %v435 = vrsqrt.pop %v403
    %v436 = vrsqrt.pop %v404
    %v437 = vrsqrt.pop %v405
    %v438 = vrsqrt.pop %v406
    %v439 = vrsqrt.pop %v407
    %v440 = vrsqrt.pop %v408
    %v441 = vrsqrt.pop %v409
    %v442 = vrsqrt.pop %v410
    %v443 = vrsqrt.pop %v411
    %v444 = vrsqrt.pop %v412
    %v445 = vmul.f32 %v189, %v413
    %v446 = vmul.f32 %v190, %v414
    %v447 = vmul.f32 %v191, %v415
    %v448 = vmul.f32 %v192, %v416
    %v449 = vmul.f32 %v193, %v417
    %v450 = vmul.f32 %v194, %v418
    %v451 = vmul.f32 %v195, %v419
    %v452 = vmul.f32 %v196, %v420
    %v453 = vmul.f32 %v197, %v421
    %v454 = vmul.f32 %v198, %v422
    %v455 = vmul.f32 %v199, %v423
    %v456 = vmul.f32 %v200, %v424
    %v457 = vmul.f32 %v201, %v425
    %v458 = vmul.f32 %v202, %v426
    %v459 = vmul.f32 %v203, %v427
    %v460 = vmul.f32 %v204, %v428
    %v461 = vmul.f32 %v205, %v429
    %v462 = vmul.f32 %v206, %v430
    %v463 = vmul.f32 %v207, %v431
    %v464 = vmul.f32 %v208, %v432
    %v465 = vmul.f32 %v209, %v433
    %v466 = vmul.f32 %v210, %v434
    %v467 = vmul.f32 %v211, %v435
    %v468 = vmul.f32 %v212, %v436
    %v469 = vmul.f32 %v213, %v437
    %v470 = vmul.f32 %v214, %v438
    %v471 = vmul.f32 %v215, %v439
    %v472 = vmul.f32 %v216, %v440
    %v473 = vmul.f32 %v217, %v441
    %v474 = vmul.f32 %v218, %v442
    %v475 = vmul.f32 %v219, %v443
    %v476 = vmul.f32 %v220, %v444
    %v477 = vld [vmem:[%s1] sm:$0x1]
    %v479 = vlaneseq
    %v480 = vshrl.u32 %v479, 7
    %v481 = vsub.s32 0, %v480
    %v482 = vrot.slane %v477, %v481
    %v484 = vmul.f32 %v445, %v482
    %v485 = vmul.f32 %v446, %v482
    %v486 = vmul.f32 %v447, %v482
    %v487 = vmul.f32 %v448, %v482
    %v488 = vmul.f32 %v449, %v482
    %v489 = vmul.f32 %v450, %v482
    %v490 = vmul.f32 %v451, %v482
    %v491 = vmul.f32 %v452, %v482
    %v492 = vmul.f32 %v453, %v482
    %v493 = vmul.f32 %v454, %v482
    %v494 = vmul.f32 %v455, %v482
    %v495 = vmul.f32 %v456, %v482
    %v496 = vmul.f32 %v457, %v482
    %v497 = vmul.f32 %v458, %v482
    %v498 = vmul.f32 %v459, %v482
    %v499 = vmul.f32 %v460, %v482
    %v500 = vmul.f32 %v461, %v482
    %v501 = vmul.f32 %v462, %v482
    %v502 = vmul.f32 %v463, %v482
    %v503 = vmul.f32 %v464, %v482
    %v504 = vmul.f32 %v465, %v482
    %v505 = vmul.f32 %v466, %v482
    %v506 = vmul.f32 %v467, %v482
    %v507 = vmul.f32 %v468, %v482
    %v508 = vmul.f32 %v469, %v482
    %v509 = vmul.f32 %v470, %v482
    %v510 = vmul.f32 %v471, %v482
    %v511 = vmul.f32 %v472, %v482
    %v512 = vmul.f32 %v473, %v482
    %v513 = vmul.f32 %v474, %v482
    %v514 = vmul.f32 %v475, %v482
    %v515 = vmul.f32 %v476, %v482
    %v516 = vld [vmem:[%s2] sm:$0x1]
    %v518 = vlaneseq
    %v519 = vshrl.u32 %v518, 7
    %v520 = vsub.s32 0, %v519
    %v521 = vrot.slane %v516, %v520
    %v523 = vadd.f32 %v484, %v521
    %v524 = vadd.f32 %v485, %v521
    %v525 = vadd.f32 %v486, %v521
    %v526 = vadd.f32 %v487, %v521
    %v527 = vadd.f32 %v488, %v521
    %v528 = vadd.f32 %v489, %v521
    %v529 = vadd.f32 %v490, %v521
    %v530 = vadd.f32 %v491, %v521
    %v531 = vadd.f32 %v492, %v521
    %v532 = vadd.f32 %v493, %v521
    %v533 = vadd.f32 %v494, %v521
    %v534 = vadd.f32 %v495, %v521
    %v535 = vadd.f32 %v496, %v521
    %v536 = vadd.f32 %v497, %v521
    %v537 = vadd.f32 %v498, %v521
    %v538 = vadd.f32 %v499, %v521
    %v539 = vadd.f32 %v500, %v521
    %v540 = vadd.f32 %v501, %v521
    %v541 = vadd.f32 %v502, %v521
    %v542 = vadd.f32 %v503, %v521
    %v543 = vadd.f32 %v504, %v521
    %v544 = vadd.f32 %v505, %v521
    %v545 = vadd.f32 %v506, %v521
    %v546 = vadd.f32 %v507, %v521
    %v547 = vadd.f32 %v508, %v521
    %v548 = vadd.f32 %v509, %v521
    %v549 = vadd.f32 %v510, %v521
    %v550 = vadd.f32 %v511, %v521
    %v551 = vadd.f32 %v512, %v521
    %v552 = vadd.f32 %v513, %v521
    %v553 = vadd.f32 %v514, %v521
    %v554 = vadd.f32 %v515, %v521
    %v555 = vld [vmem:[%s3] sm:$0xff]
    %v556 = vld [vmem:[%s3 + $0x8] sm:$0xff]
    %v557 = vld [vmem:[%s3 + $0x10] sm:$0xff]
    %v558 = vld [vmem:[%s3 + $0x18] sm:$0xff]
    %v559 = vld [vmem:[%s4] sm:$0x1]
    %v561 = vlaneseq
    %v562 = vshrl.u32 %v561, 7
    %v563 = vsub.s32 0, %v562
    %v564 = vrot.slane %v559, %v563
    %v567 = vsel %vm59, %v523, 0
    %v570 = vsel %vm59, %v524, 0
    %v573 = vsel %vm59, %v525, 0
    %v576 = vsel %vm59, %v526, 0
    %v579 = vsel %vm59, %v527, 0
    %v582 = vsel %vm59, %v528, 0
    %v585 = vsel %vm59, %v529, 0
    %v588 = vsel %vm59, %v530, 0
    %v591 = vsel %vm59, %v531, 0
    %v594 = vsel %vm59, %v532, 0
    %v597 = vsel %vm59, %v533, 0
    %v600 = vsel %vm59, %v534, 0
    %v603 = vsel %vm59, %v535, 0
    %v606 = vsel %vm59, %v536, 0
    %v609 = vsel %vm59, %v537, 0
    %v612 = vsel %vm59, %v538, 0
    %v615 = vsel %vm59, %v539, 0
    %v618 = vsel %vm59, %v540, 0
    %v621 = vsel %vm59, %v541, 0
    %v624 = vsel %vm59, %v542, 0
    %v627 = vsel %vm59, %v543, 0
    %v630 = vsel %vm59, %v544, 0
    %v633 = vsel %vm59, %v545, 0
    %v636 = vsel %vm59, %v546, 0
    %v639 = vsel %vm59, %v547, 0
    %v642 = vsel %vm59, %v548, 0
    %v645 = vsel %vm59, %v549, 0
    %v648 = vsel %vm59, %v550, 0
    %v651 = vsel %vm59, %v551, 0
    %v654 = vsel %vm59, %v552, 0
    %v657 = vsel %vm59, %v553, 0
    %v660 = vsel %vm59, %v554, 0
    %662 = vmatprep.subr.mxu0 0.0
    %663 = vmatpush1.msra.mxu0 %v555
    %664 = vmatprep.subr.mxu0 0.0
    %665 = vmatpush1.msra.mxu0 %v556
    %666 = vmatprep.subr.mxu0 0.0
    %667 = vmatpush1.msra.mxu0 %v557
    %668 = vmatprep.subr.mxu0 0.0
    %669 = vmatpush1.msra.mxu0 %v558
    %670 = vmatprep.subr.mxu0 0.0
    %671 = vmatpush1.msra.mxu0 0.0
    %672 = vmatprep.subr.mxu0 0.0
    %673 = vmatpush1.msra.mxu0 0.0
    %674 = vmatprep.subr.mxu0 0.0
    %675 = vmatpush1.msra.mxu0 0.0
    %676 = vmatprep.subr.mxu0 0.0
    %677 = vmatpush1.msra.mxu0 0.0
    %678 = vmatprep.subr.mxu0 0.0
    %679 = vmatpush1.msra.mxu0 0.0
    %680 = vmatprep.subr.mxu0 0.0
    %681 = vmatpush1.msra.mxu0 0.0
    %682 = vmatprep.subr.mxu0 0.0
    %683 = vmatpush1.msra.mxu0 0.0
    %684 = vmatprep.subr.mxu0 0.0
    %685 = vmatpush1.msra.mxu0 0.0
    %686 = vmatprep.subr.mxu0 0.0
    %687 = vmatpush1.msra.mxu0 0.0
    %688 = vmatprep.subr.mxu0 0.0
    %689 = vmatpush1.msra.mxu0 0.0
    %690 = vmatprep.subr.mxu0 0.0
    %691 = vmatpush1.msra.mxu0 0.0
    %692 = vmatprep.subr.mxu0 0.0
    %693 = vmatpush1.msra.mxu0 0.0
    %694 = vmatprep.subr.mxu0 0.0
    %695 = vmatpush1.msra.mxu0 0.0
    %696 = vmatprep.subr.mxu0 0.0
    %697 = vmatpush1.msra.mxu0 0.0
    %698 = vmatprep.subr.mxu0 0.0
    %699 = vmatpush1.msra.mxu0 0.0
    %700 = vmatprep.subr.mxu0 0.0
    %701 = vmatpush1.msra.mxu0 0.0
    %702 = vmatprep.subr.mxu0 0.0
    %703 = vmatpush1.msra.mxu0 0.0
    %704 = vmatprep.subr.mxu0 0.0
    %705 = vmatpush1.msra.mxu0 0.0
    %706 = vmatprep.subr.mxu0 0.0
    %707 = vmatpush1.msra.mxu0 0.0
    %708 = vmatprep.subr.mxu0 0.0
    %709 = vmatpush1.msra.mxu0 0.0
    %710 = vmatprep.subr.mxu0 0.0
    %711 = vmatpush1.msra.mxu0 0.0
    %712 = vmatprep.subr.mxu0 0.0
    %713 = vmatpush1.msra.mxu0 0.0
    %714 = vmatprep.subr.mxu0 0.0
    %715 = vmatpush1.msra.mxu0 0.0
    %716 = vmatprep.subr.mxu0 0.0
    %717 = vmatpush1.msra.mxu0 0.0
    %718 = vmatprep.subr.mxu0 0.0
    %719 = vmatpush1.msra.mxu0 0.0
    %720 = vmatprep.subr.mxu0 0.0
    %721 = vmatpush1.msra.mxu0 0.0
    %722 = vmatprep.subr.mxu0 0.0
    %723 = vmatpush1.msra.mxu0 0.0
    %724 = vmatprep.subr.mxu0 0.0
    %725 = vmatpush1.msra.mxu0 0.0
    %726 = vmatprep.mubr.f32.mxu0 0.0
    %727 = vmatmul.mubr.f32.gmra.mrb[0].mxu0 %v567
    %v728 = vpop.f32.mrb[0].mxu0
    %v729 = vadd.f32 %v564, %v728
    %v730 = vpop.f32.mrb[0].mxu0
    %731 = vmatprep.mubr.f32.mxu0 0.0
    %732 = vmatmul.mubr.f32.gmra.mrb[0].mxu0 %v570
    %v733 = vpop.f32.mrb[0].mxu0
    %v734 = vadd.f32 %v564, %v733
    %v735 = vpop.f32.mrb[0].mxu0
    %736 = vmatprep.mubr.f32.mxu0 0.0
    %737 = vmatmul.mubr.f32.gmra.mrb[0].mxu0 %v573
    %v738 = vpop.f32.mrb[0].mxu0
    %v739 = vadd.f32 %v564, %v738
    %v740 = vpop.f32.mrb[0].mxu0
    %741 = vmatprep.mubr.f32.mxu0 0.0
    %742 = vmatmul.mubr.f32.gmra.mrb[0].mxu0 %v576
    %v743 = vpop.f32.mrb[0].mxu0
    %v744 = vadd.f32 %v564, %v743
    %v745 = vpop.f32.mrb[0].mxu0
    %746 = vmatprep.mubr.f32.mxu0 0.0
    %747 = vmatmul.mubr.f32.gmra.mrb[0].mxu0 %v579
    %v748 = vpop.f32.mrb[0].mxu0
    %v749 = vadd.f32 %v564, %v748
    %v750 = vpop.f32.mrb[0].mxu0
    %751 = vmatprep.mubr.f32.mxu0 0.0
    %752 = vmatmul.mubr.f32.gmra.mrb[0].mxu0 %v582
    %v753 = vpop.f32.mrb[0].mxu0
    %v754 = vadd.f32 %v564, %v753
    %v755 = vpop.f32.mrb[0].mxu0
    %756 = vmatprep.mubr.f32.mxu0 0.0
    %757 = vmatmul.mubr.f32.gmra.mrb[0].mxu0 %v585
    %v758 = vpop.f32.mrb[0].mxu0
    %v759 = vadd.f32 %v564, %v758
    %v760 = vpop.f32.mrb[0].mxu0
    %761 = vmatprep.mubr.f32.mxu0 0.0
    %762 = vmatmul.mubr.f32.gmra.mrb[0].mxu0 %v588
    %v763 = vpop.f32.mrb[0].mxu0
    %v764 = vadd.f32 %v564, %v763
    %v765 = vpop.f32.mrb[0].mxu0
    %766 = vmatprep.mubr.f32.mxu0 0.0
    %767 = vmatmul.mubr.f32.gmra.mrb[0].mxu0 %v591
    %v768 = vpop.f32.mrb[0].mxu0
    %v769 = vadd.f32 %v564, %v768
    %v770 = vpop.f32.mrb[0].mxu0
    %771 = vmatprep.mubr.f32.mxu0 0.0
    %772 = vmatmul.mubr.f32.gmra.mrb[0].mxu0 %v594
    %v773 = vpop.f32.mrb[0].mxu0
    %v774 = vadd.f32 %v564, %v773
    %v775 = vpop.f32.mrb[0].mxu0
    %776 = vmatprep.mubr.f32.mxu0 0.0
    %777 = vmatmul.mubr.f32.gmra.mrb[0].mxu0 %v597
    %v778 = vpop.f32.mrb[0].mxu0
    %v779 = vadd.f32 %v564, %v778
    %v780 = vpop.f32.mrb[0].mxu0
    %781 = vmatprep.mubr.f32.mxu0 0.0
    %782 = vmatmul.mubr.f32.gmra.mrb[0].mxu0 %v600
    %v783 = vpop.f32.mrb[0].mxu0
    %v784 = vadd.f32 %v564, %v783
    %v785 = vpop.f32.mrb[0].mxu0
    %786 = vmatprep.mubr.f32.mxu0 0.0
    %787 = vmatmul.mubr.f32.gmra.mrb[0].mxu0 %v603
    %v788 = vpop.f32.mrb[0].mxu0
    %v789 = vadd.f32 %v564, %v788
    %v790 = vpop.f32.mrb[0].mxu0
    %791 = vmatprep.mubr.f32.mxu0 0.0
    %792 = vmatmul.mubr.f32.gmra.mrb[0].mxu0 %v606
    %v793 = vpop.f32.mrb[0].mxu0
    %v794 = vadd.f32 %v564, %v793
    %v795 = vpop.f32.mrb[0].mxu0
    %796 = vmatprep.mubr.f32.mxu0 0.0
    %797 = vmatmul.mubr.f32.gmra.mrb[0].mxu0 %v609
    %v798 = vpop.f32.mrb[0].mxu0
    %v799 = vadd.f32 %v564, %v798
    %v800 = vpop.f32.mrb[0].mxu0
    %801 = vmatprep.mubr.f32.mxu0 0.0
    %802 = vmatmul.mubr.f32.gmra.mrb[0].mxu0 %v612
    %v803 = vpop.f32.mrb[0].mxu0
    %v804 = vadd.f32 %v564, %v803
    %v805 = vpop.f32.mrb[0].mxu0
    %806 = vmatprep.mubr.f32.mxu0 0.0
    %807 = vmatmul.mubr.f32.gmra.mrb[0].mxu0 %v615
    %v808 = vpop.f32.mrb[0].mxu0
    %v809 = vadd.f32 %v564, %v808
    %v810 = vpop.f32.mrb[0].mxu0
    %811 = vmatprep.mubr.f32.mxu0 0.0
    %812 = vmatmul.mubr.f32.gmra.mrb[0].mxu0 %v618
    %v813 = vpop.f32.mrb[0].mxu0
    %v814 = vadd.f32 %v564, %v813
    %v815 = vpop.f32.mrb[0].mxu0
    %816 = vmatprep.mubr.f32.mxu0 0.0
    %817 = vmatmul.mubr.f32.gmra.mrb[0].mxu0 %v621
    %v818 = vpop.f32.mrb[0].mxu0
    %v819 = vadd.f32 %v564, %v818
    %v820 = vpop.f32.mrb[0].mxu0
    %821 = vmatprep.mubr.f32.mxu0 0.0
    %822 = vmatmul.mubr.f32.gmra.mrb[0].mxu0 %v624
    %v823 = vpop.f32.mrb[0].mxu0
    %v824 = vadd.f32 %v564, %v823
    %v825 = vpop.f32.mrb[0].mxu0
    %826 = vmatprep.mubr.f32.mxu0 0.0
    %827 = vmatmul.mubr.f32.gmra.mrb[0].mxu0 %v627
    %v828 = vpop.f32.mrb[0].mxu0
    %v829 = vadd.f32 %v564, %v828
    %v830 = vpop.f32.mrb[0].mxu0
    %831 = vmatprep.mubr.f32.mxu0 0.0
    %832 = vmatmul.mubr.f32.gmra.mrb[0].mxu0 %v630
    %v833 = vpop.f32.mrb[0].mxu0
    %v834 = vadd.f32 %v564, %v833
    %v835 = vpop.f32.mrb[0].mxu0
    %836 = vmatprep.mubr.f32.mxu0 0.0
    %837 = vmatmul.mubr.f32.gmra.mrb[0].mxu0 %v633
    %v838 = vpop.f32.mrb[0].mxu0
    %v839 = vadd.f32 %v564, %v838
    %v840 = vpop.f32.mrb[0].mxu0
    %841 = vmatprep.mubr.f32.mxu0 0.0
    %842 = vmatmul.mubr.f32.gmra.mrb[0].mxu0 %v636
    %v843 = vpop.f32.mrb[0].mxu0
    %v844 = vadd.f32 %v564, %v843
    %v845 = vpop.f32.mrb[0].mxu0
    %846 = vmatprep.mubr.f32.mxu0 0.0
    %847 = vmatmul.mubr.f32.gmra.mrb[0].mxu0 %v639
    %v848 = vpop.f32.mrb[0].mxu0
    %v849 = vadd.f32 %v564, %v848
    %v850 = vpop.f32.mrb[0].mxu0
    %851 = vmatprep.mubr.f32.mxu0 0.0
    %852 = vmatmul.mubr.f32.gmra.mrb[0].mxu0 %v642
    %v853 = vpop.f32.mrb[0].mxu0
    %v854 = vadd.f32 %v564, %v853
    %v855 = vpop.f32.mrb[0].mxu0
    %856 = vmatprep.mubr.f32.mxu0 0.0
    %857 = vmatmul.mubr.f32.gmra.mrb[0].mxu0 %v645
    %v858 = vpop.f32.mrb[0].mxu0
    %v859 = vadd.f32 %v564, %v858
    %v860 = vpop.f32.mrb[0].mxu0
    %861 = vmatprep.mubr.f32.mxu0 0.0
    %862 = vmatmul.mubr.f32.gmra.mrb[0].mxu0 %v648
    %v863 = vpop.f32.mrb[0].mxu0
    %v864 = vadd.f32 %v564, %v863
    %v865 = vpop.f32.mrb[0].mxu0
    %866 = vmatprep.mubr.f32.mxu0 0.0
    %867 = vmatmul.mubr.f32.gmra.mrb[0].mxu0 %v651
    %v868 = vpop.f32.mrb[0].mxu0
    %v869 = vadd.f32 %v564, %v868
    %v870 = vpop.f32.mrb[0].mxu0
    %871 = vmatprep.mubr.f32.mxu0 0.0
    %872 = vmatmul.mubr.f32.gmra.mrb[0].mxu0 %v654
    %v873 = vpop.f32.mrb[0].mxu0
    %v874 = vadd.f32 %v564, %v873
    %v875 = vpop.f32.mrb[0].mxu0
    %876 = vmatprep.mubr.f32.mxu0 0.0
    %877 = vmatmul.mubr.f32.gmra.mrb[0].mxu0 %v657
    %v878 = vpop.f32.mrb[0].mxu0
    %v879 = vadd.f32 %v564, %v878
    %v880 = vpop.f32.mrb[0].mxu0
    %881 = vmatprep.mubr.f32.mxu0 0.0
    %882 = vmatmul.mubr.f32.gmra.mrb[0].mxu0 %v660
    %v883 = vpop.f32.mrb[0].mxu0
    %v884 = vadd.f32 %v564, %v883
    %v885 = vpop.f32.mrb[0].mxu0
    %886 = vdwg.mxu0
    %v887 = vmul.f32 %v729, 0.5
    %v888 = vmul.f32 %v734, 0.5
    %v889 = vmul.f32 %v739, 0.5
    %v890 = vmul.f32 %v744, 0.5
    %v891 = vmul.f32 %v749, 0.5
    %v892 = vmul.f32 %v754, 0.5
    %v893 = vmul.f32 %v759, 0.5
    %v894 = vmul.f32 %v764, 0.5
    %v895 = vmul.f32 %v769, 0.5
    %v896 = vmul.f32 %v774, 0.5
    %v897 = vmul.f32 %v779, 0.5
    %v898 = vmul.f32 %v784, 0.5
    %v899 = vmul.f32 %v789, 0.5
    %v900 = vmul.f32 %v794, 0.5
    %v901 = vmul.f32 %v799, 0.5
    %v902 = vmul.f32 %v804, 0.5
    %v903 = vmul.f32 %v809, 0.5
    %v904 = vmul.f32 %v814, 0.5
    %v905 = vmul.f32 %v819, 0.5
    %v906 = vmul.f32 %v824, 0.5
    %v907 = vmul.f32 %v829, 0.5
    %v908 = vmul.f32 %v834, 0.5
    %v909 = vmul.f32 %v839, 0.5
    %v910 = vmul.f32 %v844, 0.5
    %v911 = vmul.f32 %v849, 0.5
    %v912 = vmul.f32 %v854, 0.5
    %v913 = vmul.f32 %v859, 0.5
    %v914 = vmul.f32 %v864, 0.5
    %v915 = vmul.f32 %v869, 0.5
    %v916 = vmul.f32 %v874, 0.5
    %v917 = vmul.f32 %v879, 0.5
    %v918 = vmul.f32 %v884, 0.5
    %v919 = vmul.f32 %v729, 0.70710677
    %v920 = vmul.f32 %v734, 0.70710677
    %v921 = vmul.f32 %v739, 0.70710677
    %v922 = vmul.f32 %v744, 0.70710677
    %v923 = vmul.f32 %v749, 0.70710677
    %v924 = vmul.f32 %v754, 0.70710677
    %v925 = vmul.f32 %v759, 0.70710677
    %v926 = vmul.f32 %v764, 0.70710677
    %v927 = vmul.f32 %v769, 0.70710677
    %v928 = vmul.f32 %v774, 0.70710677
    %v929 = vmul.f32 %v779, 0.70710677
    %v930 = vmul.f32 %v784, 0.70710677
    %v931 = vmul.f32 %v789, 0.70710677
    %v932 = vmul.f32 %v794, 0.70710677
    %v933 = vmul.f32 %v799, 0.70710677
    %v934 = vmul.f32 %v804, 0.70710677
    %v935 = vmul.f32 %v809, 0.70710677
    %v936 = vmul.f32 %v814, 0.70710677
    %v937 = vmul.f32 %v819, 0.70710677
    %v938 = vmul.f32 %v824, 0.70710677
    %v939 = vmul.f32 %v829, 0.70710677
    %v940 = vmul.f32 %v834, 0.70710677
    %v941 = vmul.f32 %v839, 0.70710677
    %v942 = vmul.f32 %v844, 0.70710677
    %v943 = vmul.f32 %v849, 0.70710677
    %v944 = vmul.f32 %v854, 0.70710677
    %v945 = vmul.f32 %v859, 0.70710677
    %v946 = vmul.f32 %v864, 0.70710677
    %v947 = vmul.f32 %v869, 0.70710677
    %v948 = vmul.f32 %v874, 0.70710677
    %v949 = vmul.f32 %v879, 0.70710677
    %v950 = vmul.f32 %v884, 0.70710677
    %v951 = verf.f32.pop %v919
    %v952 = verf.f32.pop %v920
    %v953 = verf.f32.pop %v921
    %v954 = verf.f32.pop %v922
    %v955 = verf.f32.pop %v923
    %v956 = verf.f32.pop %v924
    %v957 = verf.f32.pop %v925
    %v958 = verf.f32.pop %v926
    %v959 = verf.f32.pop %v927
    %v960 = verf.f32.pop %v928
    %v961 = verf.f32.pop %v929
    %v962 = verf.f32.pop %v930
    %v963 = verf.f32.pop %v931
    %v964 = verf.f32.pop %v932
    %v965 = verf.f32.pop %v933
    %v966 = verf.f32.pop %v934
    %v967 = verf.f32.pop %v935
    %v968 = verf.f32.pop %v936
    %v969 = verf.f32.pop %v937
    %v970 = verf.f32.pop %v938
    %v971 = verf.f32.pop %v939
    %v972 = verf.f32.pop %v940
    %v973 = verf.f32.pop %v941
    %v974 = verf.f32.pop %v942
    %v975 = verf.f32.pop %v943
    %v976 = verf.f32.pop %v944
    %v977 = verf.f32.pop %v945
    %v978 = verf.f32.pop %v946
    %v979 = verf.f32.pop %v947
    %v980 = verf.f32.pop %v948
    %v981 = verf.f32.pop %v949
    %v982 = verf.f32.pop %v950
    %v983 = vadd.f32 %v951, 1.0
    %v984 = vadd.f32 %v952, 1.0
    %v985 = vadd.f32 %v953, 1.0
    %v986 = vadd.f32 %v954, 1.0
    %v987 = vadd.f32 %v955, 1.0
    %v988 = vadd.f32 %v956, 1.0
    %v989 = vadd.f32 %v957, 1.0
    %v990 = vadd.f32 %v958, 1.0
    %v991 = vadd.f32 %v959, 1.0
    %v992 = vadd.f32 %v960, 1.0
    %v993 = vadd.f32 %v961, 1.0
    %v994 = vadd.f32 %v962, 1.0
    %v995 = vadd.f32 %v963, 1.0
    %v996 = vadd.f32 %v964, 1.0
    %v997 = vadd.f32 %v965, 1.0
    %v998 = vadd.f32 %v966, 1.0
    %v999 = vadd.f32 %v967, 1.0
    %v1000 = vadd.f32 %v968, 1.0
    %v1001 = vadd.f32 %v969, 1.0
    %v1002 = vadd.f32 %v970, 1.0
    %v1003 = vadd.f32 %v971, 1.0
    %v1004 = vadd.f32 %v972, 1.0
    %v1005 = vadd.f32 %v973, 1.0
    %v1006 = vadd.f32 %v974, 1.0
    %v1007 = vadd.f32 %v975, 1.0
    %v1008 = vadd.f32 %v976, 1.0
    %v1009 = vadd.f32 %v977, 1.0
    %v1010 = vadd.f32 %v978, 1.0
    %v1011 = vadd.f32 %v979, 1.0
    %v1012 = vadd.f32 %v980, 1.0
    %v1013 = vadd.f32 %v981, 1.0
    %v1014 = vadd.f32 %v982, 1.0
    %v1015 = vmul.f32 %v887, %v983
    %v1016 = vmul.f32 %v888, %v984
    %v1017 = vmul.f32 %v889, %v985
    %v1018 = vmul.f32 %v890, %v986
    %v1019 = vmul.f32 %v891, %v987
    %v1020 = vmul.f32 %v892, %v988
    %v1021 = vmul.f32 %v893, %v989
    %v1022 = vmul.f32 %v894, %v990
    %v1023 = vmul.f32 %v895, %v991
    %v1024 = vmul.f32 %v896, %v992
    %v1025 = vmul.f32 %v897, %v993
    %v1026 = vmul.f32 %v898, %v994
    %v1027 = vmul.f32 %v899, %v995
    %v1028 = vmul.f32 %v900, %v996
    %v1029 = vmul.f32 %v901, %v997
    %v1030 = vmul.f32 %v902, %v998
    %v1031 = vmul.f32 %v903, %v999
    %v1032 = vmul.f32 %v904, %v1000
    %v1033 = vmul.f32 %v905, %v1001
    %v1034 = vmul.f32 %v906, %v1002
    %v1035 = vmul.f32 %v907, %v1003
    %v1036 = vmul.f32 %v908, %v1004
    %v1037 = vmul.f32 %v909, %v1005
    %v1038 = vmul.f32 %v910, %v1006
    %v1039 = vmul.f32 %v911, %v1007
    %v1040 = vmul.f32 %v912, %v1008
    %v1041 = vmul.f32 %v913, %v1009
    %v1042 = vmul.f32 %v914, %v1010
    %v1043 = vmul.f32 %v915, %v1011
    %v1044 = vmul.f32 %v916, %v1012
    %v1045 = vmul.f32 %v917, %v1013
    %v1046 = vmul.f32 %v918, %v1014
    %v1047 = vld [vmem:[%s5] sm:$0xff]
    %v1048 = vld [vmem:[%s5 + $0x8] sm:$0xff]
    %v1049 = vld [vmem:[%s5 + $0x10] sm:$0xff]
    %v1050 = vld [vmem:[%s5 + $0x18] sm:$0xff]
    %v1051 = vld [vmem:[%s5 + $0x20] sm:$0xff]
    %v1052 = vld [vmem:[%s5 + $0x28] sm:$0xff]
    %v1053 = vld [vmem:[%s5 + $0x30] sm:$0xff]
    %v1054 = vld [vmem:[%s5 + $0x38] sm:$0xff]
    %v1055 = vld [vmem:[%s6] sm:$0x1]
    %v1057 = vlaneseq
    %v1058 = vshrl.u32 %v1057, 7
    %v1059 = vsub.s32 0, %v1058
    %v1060 = vrot.slane %v1055, %v1059
    %vm1062 = vcmask 523264
    %v1064 = vsel %vm1062, %v1015, 0
    %v1067 = vsel %vm1062, %v1016, 0
    %v1070 = vsel %vm1062, %v1017, 0
    %v1073 = vsel %vm1062, %v1018, 0
    %v1076 = vsel %vm1062, %v1019, 0
    %v1079 = vsel %vm1062, %v1020, 0
    %v1082 = vsel %vm1062, %v1021, 0
    %v1085 = vsel %vm1062, %v1022, 0
    %v1088 = vsel %vm1062, %v1023, 0
    %v1091 = vsel %vm1062, %v1024, 0
    %v1094 = vsel %vm1062, %v1025, 0
    %v1097 = vsel %vm1062, %v1026, 0
    %v1100 = vsel %vm1062, %v1027, 0
    %v1103 = vsel %vm1062, %v1028, 0
    %v1106 = vsel %vm1062, %v1029, 0
    %v1109 = vsel %vm1062, %v1030, 0
    %v1112 = vsel %vm1062, %v1031, 0
    %v1115 = vsel %vm1062, %v1032, 0
    %v1118 = vsel %vm1062, %v1033, 0
    %v1121 = vsel %vm1062, %v1034, 0
    %v1124 = vsel %vm1062, %v1035, 0
    %v1127 = vsel %vm1062, %v1036, 0
    %v1130 = vsel %vm1062, %v1037, 0
    %v1133 = vsel %vm1062, %v1038, 0
    %v1136 = vsel %vm1062, %v1039, 0
    %v1139 = vsel %vm1062, %v1040, 0
    %v1142 = vsel %vm1062, %v1041, 0
    %v1145 = vsel %vm1062, %v1042, 0
    %v1148 = vsel %vm1062, %v1043, 0
    %v1151 = vsel %vm1062, %v1044, 0
    %v1154 = vsel %vm1062, %v1045, 0
    %v1157 = vsel %vm1062, %v1046, 0
    %1159 = vmatprep.subr.mxu0 0.0
    %1160 = vmatpush1.msra.mxu0 %v1047
    %1161 = vmatprep.subr.mxu0 0.0
    %1162 = vmatpush1.msra.mxu0 %v1048
    %1163 = vmatprep.subr.mxu0 0.0
    %1164 = vmatpush1.msra.mxu0 %v1049
    %1165 = vmatprep.subr.mxu0 0.0
    %1166 = vmatpush1.msra.mxu0 %v1050
    %1167 = vmatprep.subr.mxu0 0.0
    %1168 = vmatpush1.msra.mxu0 %v1051
    %1169 = vmatprep.subr.mxu0 0.0
    %1170 = vmatpush1.msra.mxu0 %v1052
    %1171 = vmatprep.subr.mxu0 0.0
    %1172 = vmatpush1.msra.mxu0 %v1053
    %1173 = vmatprep.subr.mxu0 0.0
    %1174 = vmatpush1.msra.mxu0 %v1054
    %1175 = vmatprep.subr.mxu0 0.0
    %1176 = vmatpush1.msra.mxu0 0.0
    %1177 = vmatprep.subr.mxu0 0.0
    %1178 = vmatpush1.msra.mxu0 0.0
    %1179 = vmatprep.subr.mxu0 0.0
    %1180 = vmatpush1.msra.mxu0 0.0
    %1181 = vmatprep.subr.mxu0 0.0
    %1182 = vmatpush1.msra.mxu0 0.0
    %1183 = vmatprep.subr.mxu0 0.0
    %1184 = vmatpush1.msra.mxu0 0.0
    %1185 = vmatprep.subr.mxu0 0.0
    %1186 = vmatpush1.msra.mxu0 0.0
    %1187 = vmatprep.subr.mxu0 0.0
    %1188 = vmatpush1.msra.mxu0 0.0
    %1189 = vmatprep.subr.mxu0 0.0
    %1190 = vmatpush1.msra.mxu0 0.0
    %1191 = vmatprep.subr.mxu0 0.0
    %1192 = vmatpush1.msra.mxu0 0.0
    %1193 = vmatprep.subr.mxu0 0.0
    %1194 = vmatpush1.msra.mxu0 0.0
    %1195 = vmatprep.subr.mxu0 0.0
    %1196 = vmatpush1.msra.mxu0 0.0
    %1197 = vmatprep.subr.mxu0 0.0
    %1198 = vmatpush1.msra.mxu0 0.0
    %1199 = vmatprep.subr.mxu0 0.0
    %1200 = vmatpush1.msra.mxu0 0.0
    %1201 = vmatprep.subr.mxu0 0.0
    %1202 = vmatpush1.msra.mxu0 0.0
    %1203 = vmatprep.subr.mxu0 0.0
    %1204 = vmatpush1.msra.mxu0 0.0
    %1205 = vmatprep.subr.mxu0 0.0
    %1206 = vmatpush1.msra.mxu0 0.0
    %1207 = vmatprep.subr.mxu0 0.0
    %1208 = vmatpush1.msra.mxu0 0.0
    %1209 = vmatprep.subr.mxu0 0.0
    %1210 = vmatpush1.msra.mxu0 0.0
    %1211 = vmatprep.subr.mxu0 0.0
    %1212 = vmatpush1.msra.mxu0 0.0
    %1213 = vmatprep.subr.mxu0 0.0
    %1214 = vmatpush1.msra.mxu0 0.0
    %1215 = vmatprep.subr.mxu0 0.0
    %1216 = vmatpush1.msra.mxu0 0.0
    %1217 = vmatprep.subr.mxu0 0.0
    %1218 = vmatpush1.msra.mxu0 0.0
    %1219 = vmatprep.subr.mxu0 0.0
    %1220 = vmatpush1.msra.mxu0 0.0
    %1221 = vmatprep.subr.mxu0 0.0
    %1222 = vmatpush1.msra.mxu0 0.0
    %1223 = vmatprep.mubr.f32.mxu0 0.0
    %1224 = vmatmul.mubr.f32.gmra.mrb[0].mxu0 %v1064
    %v1225 = vpop.f32.mrb[0].mxu0
    %v1226 = vadd.f32 %v1060, %v1225
    %v1227 = vpop.f32.mrb[0].mxu0
    %1228 = vmatprep.mubr.f32.mxu0 0.0
    %1229 = vmatmul.mubr.f32.gmra.mrb[0].mxu0 %v1067
    %v1230 = vpop.f32.mrb[0].mxu0
    %v1231 = vadd.f32 %v1060, %v1230
    %v1232 = vpop.f32.mrb[0].mxu0
    %1233 = vmatprep.mubr.f32.mxu0 0.0
    %1234 = vmatmul.mubr.f32.gmra.mrb[0].mxu0 %v1070
    %v1235 = vpop.f32.mrb[0].mxu0
    %v1236 = vadd.f32 %v1060, %v1235
    %v1237 = vpop.f32.mrb[0].mxu0
    %1238 = vmatprep.mubr.f32.mxu0 0.0
    %1239 = vmatmul.mubr.f32.gmra.mrb[0].mxu0 %v1073
    %v1240 = vpop.f32.mrb[0].mxu0
    %v1241 = vadd.f32 %v1060, %v1240
    %v1242 = vpop.f32.mrb[0].mxu0
    %1243 = vmatprep.mubr.f32.mxu0 0.0
    %1244 = vmatmul.mubr.f32.gmra.mrb[0].mxu0 %v1076
    %v1245 = vpop.f32.mrb[0].mxu0
    %v1246 = vadd.f32 %v1060, %v1245
    %v1247 = vpop.f32.mrb[0].mxu0
    %1248 = vmatprep.mubr.f32.mxu0 0.0
    %1249 = vmatmul.mubr.f32.gmra.mrb[0].mxu0 %v1079
    %v1250 = vpop.f32.mrb[0].mxu0
    %v1251 = vadd.f32 %v1060, %v1250
    %v1252 = vpop.f32.mrb[0].mxu0
    %1253 = vmatprep.mubr.f32.mxu0 0.0
    %1254 = vmatmul.mubr.f32.gmra.mrb[0].mxu0 %v1082
    %v1255 = vpop.f32.mrb[0].mxu0
    %v1256 = vadd.f32 %v1060, %v1255
    %v1257 = vpop.f32.mrb[0].mxu0
    %1258 = vmatprep.mubr.f32.mxu0 0.0
    %1259 = vmatmul.mubr.f32.gmra.mrb[0].mxu0 %v1085
    %v1260 = vpop.f32.mrb[0].mxu0
    %v1261 = vadd.f32 %v1060, %v1260
    %v1262 = vpop.f32.mrb[0].mxu0
    %1263 = vmatprep.mubr.f32.mxu0 0.0
    %1264 = vmatmul.mubr.f32.gmra.mrb[0].mxu0 %v1088
    %v1265 = vpop.f32.mrb[0].mxu0
    %v1266 = vadd.f32 %v1060, %v1265
    %v1267 = vpop.f32.mrb[0].mxu0
    %1268 = vmatprep.mubr.f32.mxu0 0.0
    %1269 = vmatmul.mubr.f32.gmra.mrb[0].mxu0 %v1091
    %v1270 = vpop.f32.mrb[0].mxu0
    %v1271 = vadd.f32 %v1060, %v1270
    %v1272 = vpop.f32.mrb[0].mxu0
    %1273 = vmatprep.mubr.f32.mxu0 0.0
    %1274 = vmatmul.mubr.f32.gmra.mrb[0].mxu0 %v1094
    %v1275 = vpop.f32.mrb[0].mxu0
    %v1276 = vadd.f32 %v1060, %v1275
    %v1277 = vpop.f32.mrb[0].mxu0
    %1278 = vmatprep.mubr.f32.mxu0 0.0
    %1279 = vmatmul.mubr.f32.gmra.mrb[0].mxu0 %v1097
    %v1280 = vpop.f32.mrb[0].mxu0
    %v1281 = vadd.f32 %v1060, %v1280
    %v1282 = vpop.f32.mrb[0].mxu0
    %1283 = vmatprep.mubr.f32.mxu0 0.0
    %1284 = vmatmul.mubr.f32.gmra.mrb[0].mxu0 %v1100
    %v1285 = vpop.f32.mrb[0].mxu0
    %v1286 = vadd.f32 %v1060, %v1285
    %v1287 = vpop.f32.mrb[0].mxu0
    %1288 = vmatprep.mubr.f32.mxu0 0.0
    %1289 = vmatmul.mubr.f32.gmra.mrb[0].mxu0 %v1103
    %v1290 = vpop.f32.mrb[0].mxu0
    %v1291 = vadd.f32 %v1060, %v1290
    %v1292 = vpop.f32.mrb[0].mxu0
    %1293 = vmatprep.mubr.f32.mxu0 0.0
    %1294 = vmatmul.mubr.f32.gmra.mrb[0].mxu0 %v1106
    %v1295 = vpop.f32.mrb[0].mxu0
    %v1296 = vadd.f32 %v1060, %v1295
    %v1297 = vpop.f32.mrb[0].mxu0
    %1298 = vmatprep.mubr.f32.mxu0 0.0
    %1299 = vmatmul.mubr.f32.gmra.mrb[0].mxu0 %v1109
    %v1300 = vpop.f32.mrb[0].mxu0
    %v1301 = vadd.f32 %v1060, %v1300
    %v1302 = vpop.f32.mrb[0].mxu0
    %1303 = vmatprep.mubr.f32.mxu0 0.0
    %1304 = vmatmul.mubr.f32.gmra.mrb[0].mxu0 %v1112
    %v1305 = vpop.f32.mrb[0].mxu0
    %v1306 = vadd.f32 %v1060, %v1305
    %v1307 = vpop.f32.mrb[0].mxu0
    %1308 = vmatprep.mubr.f32.mxu0 0.0
    %1309 = vmatmul.mubr.f32.gmra.mrb[0].mxu0 %v1115
    %v1310 = vpop.f32.mrb[0].mxu0
    %v1311 = vadd.f32 %v1060, %v1310
    %v1312 = vpop.f32.mrb[0].mxu0
    %1313 = vmatprep.mubr.f32.mxu0 0.0
    %1314 = vmatmul.mubr.f32.gmra.mrb[0].mxu0 %v1118
    %v1315 = vpop.f32.mrb[0].mxu0
    %v1316 = vadd.f32 %v1060, %v1315
    %v1317 = vpop.f32.mrb[0].mxu0
    %1318 = vmatprep.mubr.f32.mxu0 0.0
    %1319 = vmatmul.mubr.f32.gmra.mrb[0].mxu0 %v1121
    %v1320 = vpop.f32.mrb[0].mxu0
    %v1321 = vadd.f32 %v1060, %v1320
    %v1322 = vpop.f32.mrb[0].mxu0
    %1323 = vmatprep.mubr.f32.mxu0 0.0
    %1324 = vmatmul.mubr.f32.gmra.mrb[0].mxu0 %v1124
    %v1325 = vpop.f32.mrb[0].mxu0
    %v1326 = vadd.f32 %v1060, %v1325
    %v1327 = vpop.f32.mrb[0].mxu0
    %1328 = vmatprep.mubr.f32.mxu0 0.0
    %1329 = vmatmul.mubr.f32.gmra.mrb[0].mxu0 %v1127
    %v1330 = vpop.f32.mrb[0].mxu0
    %v1331 = vadd.f32 %v1060, %v1330
    %v1332 = vpop.f32.mrb[0].mxu0
    %1333 = vmatprep.mubr.f32.mxu0 0.0
    %1334 = vmatmul.mubr.f32.gmra.mrb[0].mxu0 %v1130
    %v1335 = vpop.f32.mrb[0].mxu0
    %v1336 = vadd.f32 %v1060, %v1335
    %v1337 = vpop.f32.mrb[0].mxu0
    %1338 = vmatprep.mubr.f32.mxu0 0.0
    %1339 = vmatmul.mubr.f32.gmra.mrb[0].mxu0 %v1133
    %v1340 = vpop.f32.mrb[0].mxu0
    %v1341 = vadd.f32 %v1060, %v1340
    %v1342 = vpop.f32.mrb[0].mxu0
    %1343 = vmatprep.mubr.f32.mxu0 0.0
    %1344 = vmatmul.mubr.f32.gmra.mrb[0].mxu0 %v1136
    %v1345 = vpop.f32.mrb[0].mxu0
    %v1346 = vadd.f32 %v1060, %v1345
    %v1347 = vpop.f32.mrb[0].mxu0
    %1348 = vmatprep.mubr.f32.mxu0 0.0
    %1349 = vmatmul.mubr.f32.gmra.mrb[0].mxu0 %v1139
    %v1350 = vpop.f32.mrb[0].mxu0
    %v1351 = vadd.f32 %v1060, %v1350
    %v1352 = vpop.f32.mrb[0].mxu0
    %1353 = vmatprep.mubr.f32.mxu0 0.0
    %1354 = vmatmul.mubr.f32.gmra.mrb[0].mxu0 %v1142
    %v1355 = vpop.f32.mrb[0].mxu0
    %v1356 = vadd.f32 %v1060, %v1355
    %v1357 = vpop.f32.mrb[0].mxu0
    %1358 = vmatprep.mubr.f32.mxu0 0.0
    %1359 = vmatmul.mubr.f32.gmra.mrb[0].mxu0 %v1145
    %v1360 = vpop.f32.mrb[0].mxu0
    %v1361 = vadd.f32 %v1060, %v1360
    %v1362 = vpop.f32.mrb[0].mxu0
    %1363 = vmatprep.mubr.f32.mxu0 0.0
    %1364 = vmatmul.mubr.f32.gmra.mrb[0].mxu0 %v1148
    %v1365 = vpop.f32.mrb[0].mxu0
    %v1366 = vadd.f32 %v1060, %v1365
    %v1367 = vpop.f32.mrb[0].mxu0
    %1368 = vmatprep.mubr.f32.mxu0 0.0
    %1369 = vmatmul.mubr.f32.gmra.mrb[0].mxu0 %v1151
    %v1370 = vpop.f32.mrb[0].mxu0
    %v1371 = vadd.f32 %v1060, %v1370
    %v1372 = vpop.f32.mrb[0].mxu0
    %1373 = vmatprep.mubr.f32.mxu0 0.0
    %1374 = vmatmul.mubr.f32.gmra.mrb[0].mxu0 %v1154
    %v1375 = vpop.f32.mrb[0].mxu0
    %v1376 = vadd.f32 %v1060, %v1375
    %v1377 = vpop.f32.mrb[0].mxu0
    %1378 = vmatprep.mubr.f32.mxu0 0.0
    %1379 = vmatmul.mubr.f32.gmra.mrb[0].mxu0 %v1157
    %v1380 = vpop.f32.mrb[0].mxu0
    %v1381 = vadd.f32 %v1060, %v1380
    %v1382 = vpop.f32.mrb[0].mxu0
    %1383 = vdwg.mxu0
    %1384 = vst [vmem:[#allocation2] sm:$0xff] %v1226
    %1385 = vst [vmem:[#allocation2 + $0x8] sm:$0xff] %v1231
    %1386 = vst [vmem:[#allocation2 + $0x10] sm:$0xff] %v1236
    %1387 = vst [vmem:[#allocation2 + $0x18] sm:$0xff] %v1241
    %1388 = vst [vmem:[#allocation2 + $0x20] sm:$0xff] %v1246
    %1389 = vst [vmem:[#allocation2 + $0x28] sm:$0xff] %v1251
    %1390 = vst [vmem:[#allocation2 + $0x30] sm:$0xff] %v1256
    %1391 = vst [vmem:[#allocation2 + $0x38] sm:$0xff] %v1261
    %1392 = vst [vmem:[#allocation2 + $0x40] sm:$0xff] %v1266
    %1393 = vst [vmem:[#allocation2 + $0x48] sm:$0xff] %v1271
    %1394 = vst [vmem:[#allocation2 + $0x50] sm:$0xff] %v1276
    %1395 = vst [vmem:[#allocation2 + $0x58] sm:$0xff] %v1281
    %1396 = vst [vmem:[#allocation2 + $0x60] sm:$0xff] %v1286
    %1397 = vst [vmem:[#allocation2 + $0x68] sm:$0xff] %v1291
    %1398 = vst [vmem:[#allocation2 + $0x70] sm:$0xff] %v1296
    %1399 = vst [vmem:[#allocation2 + $0x78] sm:$0xff] %v1301
    %1400 = vst [vmem:[#allocation2 + $0x80] sm:$0xff] %v1306
    %1401 = vst [vmem:[#allocation2 + $0x88] sm:$0xff] %v1311
    %1402 = vst [vmem:[#allocation2 + $0x90] sm:$0xff] %v1316
    %1403 = vst [vmem:[#allocation2 + $0x98] sm:$0xff] %v1321
    %1404 = vst [vmem:[#allocation2 + $0xa0] sm:$0xff] %v1326
    %1405 = vst [vmem:[#allocation2 + $0xa8] sm:$0xff] %v1331
    %1406 = vst [vmem:[#allocation2 + $0xb0] sm:$0xff] %v1336
    %1407 = vst [vmem:[#allocation2 + $0xb8] sm:$0xff] %v1341
    %1408 = vst [vmem:[#allocation2 + $0xc0] sm:$0xff] %v1346
    %1409 = vst [vmem:[#allocation2 + $0xc8] sm:$0xff] %v1351
    %1410 = vst [vmem:[#allocation2 + $0xd0] sm:$0xff] %v1356
    %1411 = vst [vmem:[#allocation2 + $0xd8] sm:$0xff] %v1361
    %1412 = vst [vmem:[#allocation2 + $0xe0] sm:$0xff] %v1366
    %1413 = vst [vmem:[#allocation2 + $0xe8] sm:$0xff] %v1371
    %1414 = vst [vmem:[#allocation2 + $0xf0] sm:$0xff] %v1376
    %1415 = vst [vmem:[#allocation2 + $0xf8] sm:$0xff] %v1381
    // Predicated region
    $region30: #{tpu_custom_call.1} parent=1 // pred_check
      _
    $region31: #{tpu_custom_call.1} parent=1 // pred_check_branch
      %1417 = sbr.rel (0) target = $region33
    $region32: #{tpu_custom_call.1} parent=1 // pred_region
      %s1419 = ssub.s32 4096, 4096
      %1420 = vsyncadd [#allocation3], %s1419
      %s1421 = sshll.u32 [#allocation2], 4
      %s1422 = int_to_ptr.vmem [resolvable:$true] %s1421
      %1427 = dma.vmem_to_hbm [thread:$0]  %s1422, 4096, %s7, [#allocation3], 128, 128, 8
    $region33: #{tpu_custom_call.1} parent=1 // pred_fallthru
      _
    // Predicated region
    $region34: #{tpu_custom_call.1} parent=1 // pred_check
      _
    $region35: #{tpu_custom_call.1} parent=1 // pred_check_branch
      %1429 = sbr.rel (0) target = $region37
    $region36: #{tpu_custom_call.1} parent=1 // pred_region
      %1430 = dma.done [#allocation3], 4096
    $region37: #{tpu_custom_call.1} parent=1 // pred_fallthru
      _
    %1431 = vsyncpa [#allocation3], 1

</llo_original>
